<compile_context>
chip_gen: v7x
topology: tpu7x:2x2x1
jax: 0.10.0
libtpu: 0.0.40
codegen_flags: <defaults>
</compile_context>

<pallas_src>
import functools

import jax
import jax.numpy as jnp
from jax import lax
from jax.experimental import pallas as pl
from jax.experimental.pallas import tpu as pltpu


def _classifier_kernel(x_ref, wt_ref, b_ref, o_ref):
    # x_ref:  (TB, F)  streamed batch tile
    # wt_ref: (C, F)   resident transposed weight
    # b_ref:  (C, 1)   resident bias
    # o_ref:  (C, TB)  lane-dense output (classes on sublanes, batch on lanes)
    logits = lax.dot_general(
        wt_ref[...], x_ref[...],
        dimension_numbers=(((1,), (1,)), ((), ())),   # contract F with F -> (C, TB)
        preferred_element_type=jnp.float32,
    ) + b_ref[...]
    m = jnp.max(logits, axis=0, keepdims=True)        # (1, TB)
    e = jnp.exp(logits - m)                           # (C, TB)
    denom = jnp.sum(e, axis=0, keepdims=True)         # (1, TB)
    o_ref[...] = (e / denom).astype(o_ref.dtype)      # exact divide: rows sum to 1


def _round_up(n, m):
    return ((n + m - 1) // m) * m


@functools.partial(jax.jit, static_argnames=("block_b",))
def classifier_forward(x, w, b, *, block_b=8192):
    """x: (B, F), w: (F, C), b: (C,)  ->  (B, C) softmax probabilities (f32)."""
    B, F = x.shape
    C = w.shape[1]

    wt = w.T.astype(x.dtype)                      # (C, F) resident weight
    b2 = b.reshape(C, 1).astype(jnp.float32)      # (C, 1) resident bias

    # Batch tile: it is the lane axis of the output block, so multiple of 128
    # (or the full batch for tiny B).  Aim for ~8 grid steps on large batches
    # (megacore sharding on v7x + pipeline overlap) with the tile capped so the
    # double-buffered x slab stays far below the VMEM limit.
    if B <= 128:
        tb = B                                    # single full block, no padding rules
    else:
        tb = max(128, min(block_b, _round_up(pl.cdiv(B, 8), 128)))
    grid = (pl.cdiv(B, tb),)                      # partial last block masked by Pallas

    out = pl.pallas_call(
        _classifier_kernel,
        out_shape=jax.ShapeDtypeStruct((C, B), jnp.float32),
        grid=grid,
        in_specs=[
            pl.BlockSpec((tb, F), lambda i: (i, 0)),   # streamed x tiles
            pl.BlockSpec((C, F), lambda i: (0, 0)),    # resident W^T
            pl.BlockSpec((C, 1), lambda i: (0, 0)),    # resident bias
        ],
        out_specs=pl.BlockSpec((C, tb), lambda i: (0, i)),   # lane-dense output
        compiler_params=pltpu.CompilerParams(
            dimension_semantics=("parallel",),    # megacore sharding on v7x
            vmem_limit_bytes=32 << 20,
        ),
        cost_estimate=pl.CostEstimate(
            flops=2 * B * F * C,
            transcendentals=B * C,
            bytes_accessed=(x.size * x.dtype.itemsize
                            + C * B * 4
                            + C * F * x.dtype.itemsize
                            + C * 4),
        ),
    )(x, wt, b2)

    return out.T   # (B, C), matches F.softmax(self.fc(x), dim=1)


if __name__ == "__main__":
    key = jax.random.PRNGKey(0)
    k_x, k_w, k_b, k_x2 = jax.random.split(key, 4)

    input_features = 64
    num_classes = 3

    # deterministic synthetic parameters (shapes from nn.Linear(64, 3))
    w = jax.random.normal(k_w, (input_features, num_classes), dtype=jnp.float32) * 0.1
    b = jax.random.normal(k_b, (num_classes,), dtype=jnp.float32) * 0.1

    # small case (module-consistent): batch=8
    x = jax.random.normal(k_x, (8, input_features), dtype=jnp.float32)
    out = jax.block_until_ready(classifier_forward(x, w, b))
    ref = jax.nn.softmax(x @ w + b, axis=1)
    assert out.shape == (8, num_classes)
    assert jnp.allclose(out, ref, atol=1e-3), "mismatch vs reference (small batch)"
    assert jnp.allclose(jnp.sum(out, axis=1), 1.0, atol=1e-5)

    # ragged batch: multiple grid steps + masked partial last block (no pad copy)
    x2 = jax.random.normal(k_x2, (1037, input_features), dtype=jnp.float32)
    out2 = jax.block_until_ready(classifier_forward(x2, w, b, block_b=512))
    ref2 = jax.nn.softmax(x2 @ w + b, axis=1)
    assert out2.shape == (1037, num_classes)
    assert jnp.allclose(out2, ref2, atol=1e-3), "mismatch vs reference (tiled batch)"
    assert jnp.allclose(jnp.sum(out2, axis=1), 1.0, atol=1e-5)

    print("KERNEL_OK")
</pallas_src>

<mosaic_0001>
module attributes {stable_mosaic.version = 11 : i64} {
  func.func @_classifier_kernel(%arg0: i32, %arg1: memref<8x64xf32, #tpu.memory_space<vmem>>, %arg2: memref<3x64xf32, #tpu.memory_space<vmem>>, %arg3: memref<3x1xf32, #tpu.memory_space<vmem>>, %arg4: memref<3x8xf32, #tpu.memory_space<vmem>>) attributes {dimension_semantics = [#tpu.dimension_semantics<parallel>], iteration_bounds = array<i64: 1>, scalar_prefetch = 0 : i64, scratch_operands = 0 : i64, tpu.core_type = #tpu.core_type<tc>, window_params = [{transform_indices = @transform_0, window_bounds = array<i64: 8, 64>}, {pipeline_mode = #tpu.pipeline_mode<synchronous>, transform_indices = @transform_1, window_bounds = array<i64: 3, 64>}, {pipeline_mode = #tpu.pipeline_mode<synchronous>, transform_indices = @transform_2, window_bounds = array<i64: 3, 1>}, {transform_indices = @transform_3, window_bounds = array<i64: 3, 8>}]} {
    %c0 = arith.constant 0 : index
    %c0_0 = arith.constant 0 : index
    %0 = vector.load %arg2[%c0, %c0_0] : memref<3x64xf32, #tpu.memory_space<vmem>>, vector<3x64xf32>
    %c0_1 = arith.constant 0 : index
    %c0_2 = arith.constant 0 : index
    %1 = vector.load %arg1[%c0_1, %c0_2] : memref<8x64xf32, #tpu.memory_space<vmem>>, vector<8x64xf32>
    %cst = arith.constant dense<0.000000e+00> : vector<3x8xf32>
    %2 = tpu.matmul %0, %1, %cst {dimension_numbers = #tpu.dot_dimension_numbers<[1], [1], [0], [0], [0, 0, 1, 0], [], []>} : vector<3x64xf32>, vector<8x64xf32>, vector<3x8xf32> -> vector<3x8xf32>
    %c0_3 = arith.constant 0 : index
    %c0_4 = arith.constant 0 : index
    %3 = vector.load %arg3[%c0_3, %c0_4] : memref<3x1xf32, #tpu.memory_space<vmem>>, vector<3x1xf32>
    %4 = vector.broadcast %3 : vector<3x1xf32> to vector<3x8xf32>
    %5 = arith.addf %2, %4 : vector<3x8xf32>
    %cst_5 = arith.constant dense<0xFF800000> : vector<8xf32>
    %6 = vector.multi_reduction <maximumf>, %5, %cst_5 [0] : vector<3x8xf32> to vector<8xf32>
    %7 = vector.shape_cast %6 : vector<8xf32> to vector<1x8xf32>
    %8 = vector.broadcast %7 : vector<1x8xf32> to vector<3x8xf32>
    %9 = arith.subf %5, %8 : vector<3x8xf32>
    %10 = math.exp %9 : vector<3x8xf32>
    %cst_6 = arith.constant dense<0.000000e+00> : vector<8xf32>
    %11 = vector.multi_reduction <add>, %10, %cst_6 [0] : vector<3x8xf32> to vector<8xf32>
    %12 = vector.shape_cast %11 : vector<8xf32> to vector<1x8xf32>
    %13 = vector.broadcast %12 : vector<1x8xf32> to vector<3x8xf32>
    %14 = arith.divf %10, %13 : vector<3x8xf32>
    %c0_7 = arith.constant 0 : index
    %c0_8 = arith.constant 0 : index
    %15 = vector.load %arg4[%c0_7, %c0_8] : memref<3x8xf32, #tpu.memory_space<vmem>>, vector<3x8xf32>
    tpu.vector_store %arg4[%c0_7, %c0_8], %14 {strides = array<i32>} : memref<3x8xf32, #tpu.memory_space<vmem>>, vector<3x8xf32>,
    return
  }
  func.func @transform_0(%arg0: i32) -> (i32, i32) {
    %c0_i32 = arith.constant 0 : i32
    %c0_i32_0 = arith.constant 0 : i32
    return %arg0, %c0_i32 : i32, i32
  }
  func.func @transform_1(%arg0: i32) -> (i32, i32) {
    %c0_i32 = arith.constant 0 : i32
    %c0_i32_0 = arith.constant 0 : i32
    %c0_i32_1 = arith.constant 0 : i32
    return %c0_i32, %c0_i32_0 : i32, i32
  }
  func.func @transform_2(%arg0: i32) -> (i32, i32) {
    %c0_i32 = arith.constant 0 : i32
    %c0_i32_0 = arith.constant 0 : i32
    %c0_i32_1 = arith.constant 0 : i32
    return %c0_i32, %c0_i32_0 : i32, i32
  }
  func.func @transform_3(%arg0: i32) -> (i32, i32) {
    %c0_i32 = arith.constant 0 : i32
    %c0_i32_0 = arith.constant 0 : i32
    return %c0_i32, %arg0 : i32, i32
  }
}

</mosaic_0001>

<llo_original>
// kernel: classifier_forward.1
$region0: #{classifier_forward.1}
  #allocation0 [shape = 'u32[]', space=smem, size = 0x4, offset = 0x4, fixed_abs, tag = 'smem constant byte address 0x4 - core index']
  #allocation1 [shape = 'u32[144,128]{1,0:T(1,128)}', space=vmem, size = 0x12000, scoped, tag = 'internal scratch']
  %s0 = inlined_call_operand.vmem [shape: f32[8,64], index: 0, kind: input, shape index: {}]
  %s1 = inlined_call_operand.vmem [shape: f32[3,64], index: 1, kind: input, shape index: {}]
  %s2 = inlined_call_operand.vmem [shape: f32[3,1], index: 2, kind: input, shape index: {}]
  %s3 = inlined_call_operand.hbm [shape: f32[3,8], index: 3, kind: output, shape index: {}]
  %s4 = sld [smem:[#allocation0]]
  $region22: #{classifier_forward.1} parent=0
    _
  %s6 = ssub.s32 1, %s4
  %s7 = scalar_select 0, %s6, %s4
  $region1: #{classifier_forward.1} parent=0
    #allocation2 [shape = 'u8[2048]{0}', space=vmem, size = 0x800, scoped, tag = 'output window, operand 0, single buffered']
    #allocation3 [shape = 's32[1]{0}', space=sflag, size = 0x4, scoped, tag = 'scoped memory for classifier_forward.1']
    %8 = vsyncpa [#allocation3], 0
    // Predicated region
    $region2: #{classifier_forward.1} parent=1 // pred_check
      _
    $region3: #{classifier_forward.1} parent=1 // pred_check_branch
      %10 = sbr.rel (0) target = $region5
    $region4: #{classifier_forward.1} parent=1 // pred_region
      _
    $region5: #{classifier_forward.1} parent=1 // pred_fallthru
      _
    // Predicated region
    $region6: #{classifier_forward.1} parent=1 // pred_check
      _
    $region7: #{classifier_forward.1} parent=1 // pred_check_branch
      %12 = sbr.rel (0) target = $region9
    $region8: #{classifier_forward.1} parent=1 // pred_region
      _
    $region9: #{classifier_forward.1} parent=1 // pred_fallthru
      _
    // Predicated region
    $region10: #{classifier_forward.1} parent=1 // pred_check
      _
    $region11: #{classifier_forward.1} parent=1 // pred_check_branch
      %14 = sbr.rel (0) target = $region13
    $region12: #{classifier_forward.1} parent=1 // pred_region
      _
    $region13: #{classifier_forward.1} parent=1 // pred_fallthru
      _
    %v15 = vld [vmem:[%s1] sm:$0x7]
    %v16 = vld [vmem:[%s0] sm:$0xff]
    %v17 = vld [vmem:[%s2] sm:$0x7]
    %19 = vset.pattern.permute.xlu0 0
    %20 = vperm.xlu0 %19, %v17
    %v21 = vpop.permute.xlu0 %20
    %vm23 = vcmask 523264
    %v25 = vsel %vm23, %v15, 0
    %v28 = vsel %vm23, %v16, 0
    %30 = vmatprep.subr.mxu0 0.0
    %31 = vmatpush1.xpose.msra.mxu0 %v28
    %32 = vmatprep.subr.mxu0 0.0
    %33 = vmatpush1.xpose.msra.mxu0 0.0
    %34 = vmatprep.subr.mxu0 0.0
    %35 = vmatpush1.xpose.msra.mxu0 0.0
    %36 = vmatprep.subr.mxu0 0.0
    %37 = vmatpush1.xpose.msra.mxu0 0.0
    %38 = vmatprep.subr.mxu0 0.0
    %39 = vmatpush1.xpose.msra.mxu0 0.0
    %40 = vmatprep.subr.mxu0 0.0
    %41 = vmatpush1.xpose.msra.mxu0 0.0
    %42 = vmatprep.subr.mxu0 0.0
    %43 = vmatpush1.xpose.msra.mxu0 0.0
    %44 = vmatprep.subr.mxu0 0.0
    %45 = vmatpush1.xpose.msra.mxu0 0.0
    %46 = vmatprep.subr.mxu0 0.0
    %47 = vmatpush1.xpose.msra.mxu0 0.0
    %48 = vmatprep.subr.mxu0 0.0
    %49 = vmatpush1.xpose.msra.mxu0 0.0
    %50 = vmatprep.subr.mxu0 0.0
    %51 = vmatpush1.xpose.msra.mxu0 0.0
    %52 = vmatprep.subr.mxu0 0.0
    %53 = vmatpush1.xpose.msra.mxu0 0.0
    %54 = vmatprep.subr.mxu0 0.0
    %55 = vmatpush1.xpose.msra.mxu0 0.0
    %56 = vmatprep.subr.mxu0 0.0
    %57 = vmatpush1.xpose.msra.mxu0 0.0
    %58 = vmatprep.subr.mxu0 0.0
    %59 = vmatpush1.xpose.msra.mxu0 0.0
    %60 = vmatprep.subr.mxu0 0.0
    %61 = vmatpush1.xpose.msra.mxu0 0.0
    %62 = vmatprep.subr.mxu0 0.0
    %63 = vmatpush1.xpose.msra.mxu0 0.0
    %64 = vmatprep.subr.mxu0 0.0
    %65 = vmatpush1.xpose.msra.mxu0 0.0
    %66 = vmatprep.subr.mxu0 0.0
    %67 = vmatpush1.xpose.msra.mxu0 0.0
    %68 = vmatprep.subr.mxu0 0.0
    %69 = vmatpush1.xpose.msra.mxu0 0.0
    %70 = vmatprep.subr.mxu0 0.0
    %71 = vmatpush1.xpose.msra.mxu0 0.0
    %72 = vmatprep.subr.mxu0 0.0
    %73 = vmatpush1.xpose.msra.mxu0 0.0
    %74 = vmatprep.subr.mxu0 0.0
    %75 = vmatpush1.xpose.msra.mxu0 0.0
    %76 = vmatprep.subr.mxu0 0.0
    %77 = vmatpush1.xpose.msra.mxu0 0.0
    %78 = vmatprep.subr.mxu0 0.0
    %79 = vmatpush1.xpose.msra.mxu0 0.0
    %80 = vmatprep.subr.mxu0 0.0
    %81 = vmatpush1.xpose.msra.mxu0 0.0
    %82 = vmatprep.subr.mxu0 0.0
    %83 = vmatpush1.xpose.msra.mxu0 0.0
    %84 = vmatprep.subr.mxu0 0.0
    %85 = vmatpush1.xpose.msra.mxu0 0.0
    %86 = vmatprep.subr.mxu0 0.0
    %87 = vmatpush1.xpose.msra.mxu0 0.0
    %88 = vmatprep.subr.mxu0 0.0
    %89 = vmatpush1.xpose.msra.mxu0 0.0
    %90 = vmatprep.subr.mxu0 0.0
    %91 = vmatpush1.xpose.msra.mxu0 0.0
    %92 = vmatprep.subr.mxu0 0.0
    %93 = vmatpush1.xpose.msra.mxu0 0.0
    %94 = vmatprep.mubr.f32.mxu0 0.0
    %95 = vmatmul.mubr.f32.gmra.mrb[0].mxu0 %v25
    %v96 = vpop.f32.mrb[0].mxu0
    %v97 = vadd.f32 %v21, %v96
    %v98 = vpop.f32.mrb[0].mxu0
    %99 = vdwg.mxu0
    %vm100 = vcmask 59392
    %v101 = vsel %vm100, %v97, -inf
    %v102 = vrot.slane %v101, 4
    %v103 = vmax.f32 %v101, %v102
    %v104 = vrot.slane %v103, 2
    %v105 = vmax.f32 %v103, %v104
    %v106 = vrot.slane %v105, 1
    %v107 = vmax.f32 %v105, %v106
    %v108 = vsub.f32 %v97, %v107
    %v109 = vmul.f32 %v108, 1.442695
    %v110 = vpow.pop %v109
    %v111 = vsel %vm100, %v110, 0.0
    %v112 = vrot.slane %v111, 4
    %v113 = vadd.f32 %v111, %v112
    %v114 = vrot.slane %v113, 2
    %v115 = vadd.f32 %v113, %v114
    %v116 = vrot.slane %v115, 1
    %v117 = vadd.f32 %v115, %v116
    %v118 = vrcp.pop %v117
    %v119 = vmul.f32 %v110, %v118
    %120 = vst.msk [vmem:[#allocation2] sm:$0x7] %vm100, %v119
    // Predicated region
    $region14: #{classifier_forward.1} parent=1 // pred_check
      _
    $region15: #{classifier_forward.1} parent=1 // pred_check_branch
      %122 = sbr.rel (0) target = $region17
    $region16: #{classifier_forward.1} parent=1 // pred_region
      %s124 = ssub.s32 64, 64
      %125 = vsyncadd [#allocation3], %s124
      %s127 = sshll.u32 [#allocation2], 4
      %s128 = int_to_ptr.vmem [resolvable:$true] %s127
      %130 = dma.vmem_to_hbm [thread:$0]  %s128, 64, %s3, [#allocation3]
    $region17: #{classifier_forward.1} parent=1 // pred_fallthru
      _
    // Predicated region
    $region18: #{classifier_forward.1} parent=1 // pred_check
      _
    $region19: #{classifier_forward.1} parent=1 // pred_check_branch
      %132 = sbr.rel (0) target = $region21
    $region20: #{classifier_forward.1} parent=1 // pred_region
      %133 = dma.done [#allocation3], 64
    $region21: #{classifier_forward.1} parent=1 // pred_fallthru
      _
    %134 = vsyncpa [#allocation3], 1

</llo_original>
